<compile_context>
chip_gen: v7x
topology: tpu7x:2x2x1
jax: 0.10.0
libtpu: 0.0.40
codegen_flags: <defaults>
</compile_context>

<pallas_src>
import functools

import jax
import jax.numpy as jnp
from jax.experimental import pallas as pl
from jax.experimental.pallas import tpu as pltpu

# Logical model dims (match the PyTorch module).
IN_DIM = 100
H1 = 128
H2 = 128
OUT_DIM = 10

OUT_PAD = 128  # lane-dense padded output width (real cols = 10)


def mlp_kernel(x_ref, w1_ref, b1_ref, w2_ref, b2_ref, w3_ref, b3_ref, o_ref):
    wdt = w1_ref.dtype  # f32 or bf16; biases/accum/epilogue are always f32.
    # Layer 1: (tm, 100) @ (100, 128) + (1, 128) -> ReLU   (f32 accumulation)
    h = jnp.dot(x_ref[...].astype(wdt), w1_ref[...],
                preferred_element_type=jnp.float32)
    h = jnp.maximum(h + b1_ref[...], 0.0)
    # Layer 2: (tm, 128) @ (128, 128) + (1, 128) -> ReLU
    h = jnp.dot(h.astype(wdt), w2_ref[...], preferred_element_type=jnp.float32)
    h = jnp.maximum(h + b2_ref[...], 0.0)
    # Layer 3: (tm, 128) @ (128, 128) + (1, 128)   (lane-dense; real cols = 10)
    h = jnp.dot(h.astype(wdt), w3_ref[...], preferred_element_type=jnp.float32)
    o_ref[...] = (h + b3_ref[...]).astype(o_ref.dtype)


def prepare_params(w1, b1, w2, b2, w3, b3, *, weights_dtype=jnp.float32):
    """One-time parameter prep (run outside the hot path).

    Pads fc3 to 128 output lanes (zero cols contribute exactly b3's zero pad)
    and optionally casts the weight matrices to bf16 for v6e/v7x.  Biases stay
    f32 so the bias-add/ReLU epilogue is f32 on every chip generation.
    Weights are [in, out]; biases are [1, out].
    """
    w3_p = jnp.pad(w3, ((0, 0), (0, OUT_PAD - OUT_DIM)))
    b3_p = jnp.pad(b3, ((0, 0), (0, OUT_PAD - OUT_DIM)))
    return (w1.astype(weights_dtype), b1.astype(jnp.float32),
            w2.astype(weights_dtype), b2.astype(jnp.float32),
            w3_p.astype(weights_dtype), b3_p.astype(jnp.float32))


def _pick_tm(batch):
    # Batch-adaptive tile: amortize per-grid-step overhead at large B while
    # keeping >=2 grid steps (v7x dual-TensorCore sharding) once B >= 256.
    if batch >= 1024:
        return 512
    if batch >= 512:
        return 256
    return 128


@functools.partial(jax.jit, static_argnames=("return_padded",))
def simple_mlp(x, params, *, return_padded=False):
    w1, b1, w2, b2, w3, b3 = params
    B, K = x.shape
    assert K == IN_DIM
    assert w3.shape[1] == OUT_PAD, "params must come from prepare_params()"

    tm = _pick_tm(B)
    if B <= tm:
        # Single block covering the whole (possibly ragged) batch: a block dim
        # equal to the full array dim is legal, so no batch padding is needed
        # for the small-batch / reference case.
        tm = B
        b_pad = B
        x_in = x
    else:
        b_pad = pl.cdiv(B, tm) * tm
        x_in = x if b_pad == B else jnp.pad(x, ((0, b_pad - B), (0, 0)))

    grid = (b_pad // tm,)

    moving = lambda i: (i, 0)
    const = lambda i: (0, 0)
    # Weight/bias blocks never change block index -> VMEM-resident, and
    # single-buffered (double-buffering constants just doubles their footprint).
    const_kw = dict(pipeline_mode=pl.Buffered(1))
    in_specs = [
        pl.BlockSpec((tm, IN_DIM), moving),              # x tile (ragged K ok)
        pl.BlockSpec((IN_DIM, H1), const, **const_kw),   # w1
        pl.BlockSpec((1, H1), const, **const_kw),        # b1
        pl.BlockSpec((H1, H2), const, **const_kw),       # w2
        pl.BlockSpec((1, H2), const, **const_kw),        # b2
        pl.BlockSpec((H2, OUT_PAD), const, **const_kw),  # w3 (lane-padded)
        pl.BlockSpec((1, OUT_PAD), const, **const_kw),   # b3 (lane-padded)
    ]
    out_specs = pl.BlockSpec((tm, OUT_PAD), moving)

    wbytes = jnp.dtype(w1.dtype).itemsize
    flops = 2 * b_pad * (IN_DIM * H1 + H1 * H2 + H2 * OUT_PAD)
    bytes_accessed = (
        4 * b_pad * IN_DIM                                   # x
        + wbytes * (IN_DIM * H1 + H1 * H2 + H2 * OUT_PAD)    # weights
        + 4 * (H1 + H2 + OUT_PAD)                            # biases
        + 4 * b_pad * OUT_PAD                                # output
    )

    out_p = pl.pallas_call(
        mlp_kernel,
        out_shape=jax.ShapeDtypeStruct((b_pad, OUT_PAD), jnp.float32),
        grid=grid,
        in_specs=in_specs,
        out_specs=out_specs,
        compiler_params=pltpu.CompilerParams(
            dimension_semantics=("parallel",)),
        cost_estimate=pl.CostEstimate(
            flops=flops, bytes_accessed=bytes_accessed, transcendentals=0),
    )(x_in, w1, b1, w2, b2, w3, b3)

    if return_padded:
        # Lane-dense padded slab: cols >= OUT_DIM are zero, rows >= B are junk.
        return out_p
    return out_p[:B, :OUT_DIM]


def init_params(key):
    # Deterministic init mimicking torch.nn.Linear default (uniform in
    # [-1/sqrt(fan_in), 1/sqrt(fan_in)]). Weights stored as [in, out].
    dims = [(IN_DIM, H1), (H1, H2), (H2, OUT_DIM)]
    params = []
    for fan_in, fan_out in dims:
        key, kw, kb = jax.random.split(key, 3)
        bound = 1.0 / jnp.sqrt(fan_in)
        w = jax.random.uniform(kw, (fan_in, fan_out), jnp.float32, -bound, bound)
        b = jax.random.uniform(kb, (1, fan_out), jnp.float32, -bound, bound)
        params += [w, b]
    return params


if __name__ == "__main__":
    key = jax.random.PRNGKey(0)
    key, kx = jax.random.split(key)
    # Matches the reference module: x = torch.randn(100, 100)
    x = jax.random.normal(kx, (100, IN_DIM), jnp.float32)

    raw = init_params(key)  # (w1, b1, w2, b2, w3, b3)

    # Pure-JAX reference at highest matmul precision.
    def ref_fwd(x, params):
        w1, b1, w2, b2, w3, b3 = params
        hp = jax.lax.Precision.HIGHEST
        h = jnp.maximum(jnp.dot(x, w1, precision=hp) + b1, 0.0)
        h = jnp.maximum(jnp.dot(h, w2, precision=hp) + b2, 0.0)
        return jnp.dot(h, w3, precision=hp) + b3

    ref = ref_fwd(x, raw)

    # f32 path (default; exact-ish).
    params_f32 = prepare_params(*raw)
    out = jax.block_until_ready(simple_mlp(x, params_f32))
    assert out.shape == (100, OUT_DIM)
    assert jnp.allclose(out, ref, atol=1e-3, rtol=1e-3)

    # bf16-weight path (v6e/v7x memory-bound optimization); looser tolerance.
    params_bf16 = prepare_params(*raw, weights_dtype=jnp.bfloat16)
    out_bf16 = jax.block_until_ready(simple_mlp(x, params_bf16))
    assert out_bf16.shape == (100, OUT_DIM)
    assert jnp.allclose(out_bf16, ref, atol=5e-2, rtol=5e-2)

    print("KERNEL_OK")
</pallas_src>

<mosaic_0001>
module attributes {stable_mosaic.version = 11 : i64} {
  func.func @mlp_kernel(%arg0: i32, %arg1: memref<100x100xf32, #tpu.memory_space<vmem>>, %arg2: memref<100x128xf32, #tpu.memory_space<vmem>>, %arg3: memref<1x128xf32, #tpu.memory_space<vmem>>, %arg4: memref<128x128xf32, #tpu.memory_space<vmem>>, %arg5: memref<1x128xf32, #tpu.memory_space<vmem>>, %arg6: memref<128x128xf32, #tpu.memory_space<vmem>>, %arg7: memref<1x128xf32, #tpu.memory_space<vmem>>, %arg8: memref<100x128xf32, #tpu.memory_space<vmem>>) attributes {dimension_semantics = [#tpu.dimension_semantics<parallel>], iteration_bounds = array<i64: 1>, scalar_prefetch = 0 : i64, scratch_operands = 0 : i64, tpu.core_type = #tpu.core_type<tc>, window_params = [{transform_indices = @transform_0, window_bounds = array<i64: 100, 100>}, {pipeline_mode = #tpu.pipeline_mode<synchronous>, transform_indices = @transform_1, window_bounds = array<i64: 100, 128>}, {pipeline_mode = #tpu.pipeline_mode<synchronous>, transform_indices = @transform_2, window_bounds = array<i64: 1, 128>}, {pipeline_mode = #tpu.pipeline_mode<synchronous>, transform_indices = @transform_3, window_bounds = array<i64: 128, 128>}, {pipeline_mode = #tpu.pipeline_mode<synchronous>, transform_indices = @transform_4, window_bounds = array<i64: 1, 128>}, {pipeline_mode = #tpu.pipeline_mode<synchronous>, transform_indices = @transform_5, window_bounds = array<i64: 128, 128>}, {pipeline_mode = #tpu.pipeline_mode<synchronous>, transform_indices = @transform_6, window_bounds = array<i64: 1, 128>}, {transform_indices = @transform_7, window_bounds = array<i64: 100, 128>}]} {
    %c0 = arith.constant 0 : index
    %c0_0 = arith.constant 0 : index
    %0 = vector.load %arg1[%c0, %c0_0] : memref<100x100xf32, #tpu.memory_space<vmem>>, vector<100x100xf32>
    %c0_1 = arith.constant 0 : index
    %c0_2 = arith.constant 0 : index
    %1 = vector.load %arg2[%c0_1, %c0_2] : memref<100x128xf32, #tpu.memory_space<vmem>>, vector<100x128xf32>
    %cst = arith.constant dense<0.000000e+00> : vector<100x128xf32>
    %2 = tpu.matmul %0, %1, %cst {dimension_numbers = #tpu.dot_dimension_numbers<[1], [0], [0], [1], [0, 0, 1, 1], [], []>} : vector<100x100xf32>, vector<100x128xf32>, vector<100x128xf32> -> vector<100x128xf32>
    %c0_3 = arith.constant 0 : index
    %c0_4 = arith.constant 0 : index
    %3 = vector.load %arg3[%c0_3, %c0_4] : memref<1x128xf32, #tpu.memory_space<vmem>>, vector<1x128xf32>
    %4 = vector.broadcast %3 : vector<1x128xf32> to vector<100x128xf32>
    %5 = arith.addf %2, %4 : vector<100x128xf32>
    %cst_5 = arith.constant 0.000000e+00 : f32
    %6 = vector.broadcast %cst_5 : f32 to vector<100x128xf32>
    %7 = arith.maximumf %5, %6 : vector<100x128xf32>
    %c0_6 = arith.constant 0 : index
    %c0_7 = arith.constant 0 : index
    %8 = vector.load %arg4[%c0_6, %c0_7] : memref<128x128xf32, #tpu.memory_space<vmem>>, vector<128x128xf32>
    %cst_8 = arith.constant dense<0.000000e+00> : vector<100x128xf32>
    %9 = tpu.matmul %7, %8, %cst_8 {dimension_numbers = #tpu.dot_dimension_numbers<[1], [0], [0], [1], [0, 0, 1, 1], [], []>} : vector<100x128xf32>, vector<128x128xf32>, vector<100x128xf32> -> vector<100x128xf32>
    %c0_9 = arith.constant 0 : index
    %c0_10 = arith.constant 0 : index
    %10 = vector.load %arg5[%c0_9, %c0_10] : memref<1x128xf32, #tpu.memory_space<vmem>>, vector<1x128xf32>
    %11 = vector.broadcast %10 : vector<1x128xf32> to vector<100x128xf32>
    %12 = arith.addf %9, %11 : vector<100x128xf32>
    %cst_11 = arith.constant 0.000000e+00 : f32
    %13 = vector.broadcast %cst_11 : f32 to vector<100x128xf32>
    %14 = arith.maximumf %12, %13 : vector<100x128xf32>
    %c0_12 = arith.constant 0 : index
    %c0_13 = arith.constant 0 : index
    %15 = vector.load %arg6[%c0_12, %c0_13] : memref<128x128xf32, #tpu.memory_space<vmem>>, vector<128x128xf32>
    %cst_14 = arith.constant dense<0.000000e+00> : vector<100x128xf32>
    %16 = tpu.matmul %14, %15, %cst_14 {dimension_numbers = #tpu.dot_dimension_numbers<[1], [0], [0], [1], [0, 0, 1, 1], [], []>} : vector<100x128xf32>, vector<128x128xf32>, vector<100x128xf32> -> vector<100x128xf32>
    %c0_15 = arith.constant 0 : index
    %c0_16 = arith.constant 0 : index
    %17 = vector.load %arg7[%c0_15, %c0_16] : memref<1x128xf32, #tpu.memory_space<vmem>>, vector<1x128xf32>
    %18 = vector.broadcast %17 : vector<1x128xf32> to vector<100x128xf32>
    %19 = arith.addf %16, %18 : vector<100x128xf32>
    %c0_17 = arith.constant 0 : index
    %c0_18 = arith.constant 0 : index
    %20 = vector.load %arg8[%c0_17, %c0_18] : memref<100x128xf32, #tpu.memory_space<vmem>>, vector<100x128xf32>
    tpu.vector_store %arg8[%c0_17, %c0_18], %19 {strides = array<i32>} : memref<100x128xf32, #tpu.memory_space<vmem>>, vector<100x128xf32>,
    return
  }
  func.func @transform_0(%arg0: i32) -> (i32, i32) {
    %c0_i32 = arith.constant 0 : i32
    %c0_i32_0 = arith.constant 0 : i32
    return %arg0, %c0_i32 : i32, i32
  }
  func.func @transform_1(%arg0: i32) -> (i32, i32) {
    %c0_i32 = arith.constant 0 : i32
    %c0_i32_0 = arith.constant 0 : i32
    %c0_i32_1 = arith.constant 0 : i32
    return %c0_i32, %c0_i32_0 : i32, i32
  }
  func.func @transform_2(%arg0: i32) -> (i32, i32) {
    %c0_i32 = arith.constant 0 : i32
    %c0_i32_0 = arith.constant 0 : i32
    %c0_i32_1 = arith.constant 0 : i32
    return %c0_i32, %c0_i32_0 : i32, i32
  }
  func.func @transform_3(%arg0: i32) -> (i32, i32) {
    %c0_i32 = arith.constant 0 : i32
    %c0_i32_0 = arith.constant 0 : i32
    %c0_i32_1 = arith.constant 0 : i32
    return %c0_i32, %c0_i32_0 : i32, i32
  }
  func.func @transform_4(%arg0: i32) -> (i32, i32) {
    %c0_i32 = arith.constant 0 : i32
    %c0_i32_0 = arith.constant 0 : i32
    %c0_i32_1 = arith.constant 0 : i32
    return %c0_i32, %c0_i32_0 : i32, i32
  }
  func.func @transform_5(%arg0: i32) -> (i32, i32) {
    %c0_i32 = arith.constant 0 : i32
    %c0_i32_0 = arith.constant 0 : i32
    %c0_i32_1 = arith.constant 0 : i32
    return %c0_i32, %c0_i32_0 : i32, i32
  }
  func.func @transform_6(%arg0: i32) -> (i32, i32) {
    %c0_i32 = arith.constant 0 : i32
    %c0_i32_0 = arith.constant 0 : i32
    %c0_i32_1 = arith.constant 0 : i32
    return %c0_i32, %c0_i32_0 : i32, i32
  }
  func.func @transform_7(%arg0: i32) -> (i32, i32) {
    %c0_i32 = arith.constant 0 : i32
    %c0_i32_0 = arith.constant 0 : i32
    return %arg0, %c0_i32 : i32, i32
  }
}

</mosaic_0001>

<llo_original>
// kernel: simple_mlp.1
$region0: #{simple_mlp.1}
  #allocation0 [shape = 'u32[]', space=smem, size = 0x4, offset = 0x4, fixed_abs, tag = 'smem constant byte address 0x4 - core index']
  #allocation1 [shape = 'u32[144,128]{1,0:T(1,128)}', space=vmem, size = 0x12000, scoped, tag = 'internal scratch']
  %s0 = inlined_call_operand.hbm [shape: f32[100,100], index: 0, kind: input, shape index: {}]
  %s1 = inlined_call_operand.hbm [shape: f32[100,128], index: 1, kind: input, shape index: {}]
  %s2 = inlined_call_operand.vmem [shape: f32[1,128], index: 2, kind: input, shape index: {}]
  %s3 = inlined_call_operand.hbm [shape: f32[128,128], index: 3, kind: input, shape index: {}]
  %s4 = inlined_call_operand.vmem [shape: f32[1,128], index: 4, kind: input, shape index: {}]
  %s5 = inlined_call_operand.hbm [shape: f32[128,128], index: 5, kind: input, shape index: {}]
  %s6 = inlined_call_operand.vmem [shape: f32[1,128], index: 6, kind: input, shape index: {}]
  %s7 = inlined_call_operand.vmem [shape: f32[100,128], index: 7, kind: output, shape index: {}]
  %s8 = sld [smem:[#allocation0]]
  $region54: #{simple_mlp.1} parent=0
    _
  %s10 = ssub.s32 1, %s8
  %s11 = scalar_select 0, %s10, %s8
  $region1: #{simple_mlp.1} parent=0
    #allocation2 [shape = 'u8[53248]{0}', space=vmem, size = 0xd000, scoped, tag = 'input window, operand 0, single buffered']
    #allocation3 [shape = 's32[1]{0}', space=sflag, size = 0x4, scoped, tag = 'scoped memory for simple_mlp.1']
    #allocation4 [shape = 'u8[53248]{0}', space=vmem, size = 0xd000, scoped, tag = 'input window, operand 1, single buffered']
    #allocation5 [shape = 's32[1]{0}', space=sflag, size = 0x4, scoped, tag = 'scoped memory for simple_mlp.1']
    #allocation6 [shape = 'u8[65536]{0}', space=vmem, size = 0x10000, scoped, tag = 'input window, operand 3, single buffered']
    #allocation7 [shape = 'u8[65536]{0}', space=vmem, size = 0x10000, scoped, tag = 'input window, operand 5, single buffered']
    #allocation8 [shape = 's32[1]{0}', space=sflag, size = 0x4, scoped, tag = 'scoped memory for simple_mlp.1']
    %12 = vsyncpa [#allocation3], 0
    %13 = vsyncpa [#allocation5], 0
    %14 = vsyncpa [#allocation8], 0
    // Predicated region
    $region2: #{simple_mlp.1} parent=1 // pred_check
      _
    $region3: #{simple_mlp.1} parent=1 // pred_check_branch
      %16 = sbr.rel (0) target = $region5
    $region4: #{simple_mlp.1} parent=1 // pred_region
      %s18 = ssub.s32 1664, 1664
      %19 = vsyncadd [#allocation3], %s18
      %s20 = sshll.u32 [#allocation2], 4
      %s21 = int_to_ptr.vmem [resolvable:$true] %s20
      %26 = dma.hbm_to_vmem [thread:$0]  %s0, 1664, %s21, [#allocation3], 128, 128, 8
    $region5: #{simple_mlp.1} parent=1 // pred_fallthru
      _
    // Predicated region
    $region6: #{simple_mlp.1} parent=1 // pred_check
      _
    $region7: #{simple_mlp.1} parent=1 // pred_check_branch
      %28 = sbr.rel (0) target = $region9
    $region8: #{simple_mlp.1} parent=1 // pred_region
      %s30 = ssub.s32 1664, 1664
      %31 = vsyncadd [#allocation5], %s30
      %s32 = sshll.u32 [#allocation4], 4
      %s33 = int_to_ptr.vmem [resolvable:$true] %s32
      %38 = dma.hbm_to_vmem [thread:$0]  %s1, 1664, %s33, [#allocation5], 128, 128, 8
    $region9: #{simple_mlp.1} parent=1 // pred_fallthru
      _
    // Predicated region
    $region10: #{simple_mlp.1} parent=1 // pred_check
      _
    $region11: #{simple_mlp.1} parent=1 // pred_check_branch
      %40 = sbr.rel (0) target = $region13
    $region12: #{simple_mlp.1} parent=1 // pred_region
      _
    $region13: #{simple_mlp.1} parent=1 // pred_fallthru
      _
    // Predicated region
    $region14: #{simple_mlp.1} parent=1 // pred_check
      _
    $region15: #{simple_mlp.1} parent=1 // pred_check_branch
      %42 = sbr.rel (0) target = $region17
    $region16: #{simple_mlp.1} parent=1 // pred_region
      %s44 = ssub.s32 2048, 2048
      %45 = vsyncadd [#allocation5], %s44
      %s46 = sshll.u32 [#allocation6], 4
      %s47 = int_to_ptr.vmem [resolvable:$true] %s46
      %52 = dma.hbm_to_vmem [thread:$0]  %s3, 2048, %s47, [#allocation5], 128, 128, 8
    $region17: #{simple_mlp.1} parent=1 // pred_fallthru
      _
    // Predicated region
    $region18: #{simple_mlp.1} parent=1 // pred_check
      _
    $region19: #{simple_mlp.1} parent=1 // pred_check_branch
      %54 = sbr.rel (0) target = $region21
    $region20: #{simple_mlp.1} parent=1 // pred_region
      _
    $region21: #{simple_mlp.1} parent=1 // pred_fallthru
      _
    // Predicated region
    $region22: #{simple_mlp.1} parent=1 // pred_check
      _
    $region23: #{simple_mlp.1} parent=1 // pred_check_branch
      %56 = sbr.rel (0) target = $region25
    $region24: #{simple_mlp.1} parent=1 // pred_region
      %s58 = ssub.s32 2048, 2048
      %59 = vsyncadd [#allocation8], %s58
      %s60 = sshll.u32 [#allocation7], 4
      %s61 = int_to_ptr.vmem [resolvable:$true] %s60
      %66 = dma.hbm_to_vmem [thread:$0]  %s5, 2048, %s61, [#allocation8], 128, 128, 8
    $region25: #{simple_mlp.1} parent=1 // pred_fallthru
      _
    // Predicated region
    $region26: #{simple_mlp.1} parent=1 // pred_check
      _
    $region27: #{simple_mlp.1} parent=1 // pred_check_branch
      %68 = sbr.rel (0) target = $region29
    $region28: #{simple_mlp.1} parent=1 // pred_region
      _
    $region29: #{simple_mlp.1} parent=1 // pred_fallthru
      _
    // Predicated region
    $region30: #{simple_mlp.1} parent=1 // pred_check
      _
    $region31: #{simple_mlp.1} parent=1 // pred_check_branch
      %70 = sbr.rel (0) target = $region33
    $region32: #{simple_mlp.1} parent=1 // pred_region
      %71 = dma.done [#allocation3], 1664
    $region33: #{simple_mlp.1} parent=1 // pred_fallthru
      _
    // Predicated region
    $region34: #{simple_mlp.1} parent=1 // pred_check
      _
    $region35: #{simple_mlp.1} parent=1 // pred_check_branch
      %73 = sbr.rel (0) target = $region37
    $region36: #{simple_mlp.1} parent=1 // pred_region
      %74 = dma.done [#allocation5], 1664
    $region37: #{simple_mlp.1} parent=1 // pred_fallthru
      _
    // Predicated region
    $region38: #{simple_mlp.1} parent=1 // pred_check
      _
    $region39: #{simple_mlp.1} parent=1 // pred_check_branch
      %76 = sbr.rel (0) target = $region41
    $region40: #{simple_mlp.1} parent=1 // pred_region
      %77 = dma.done [#allocation5], 2048
    $region41: #{simple_mlp.1} parent=1 // pred_fallthru
      _
    // Predicated region
    $region42: #{simple_mlp.1} parent=1 // pred_check
      _
    $region43: #{simple_mlp.1} parent=1 // pred_check_branch
      %79 = sbr.rel (0) target = $region45
    $region44: #{simple_mlp.1} parent=1 // pred_region
      %80 = dma.done [#allocation8], 2048
    $region45: #{simple_mlp.1} parent=1 // pred_fallthru
      _
    %v81 = vld [vmem:[#allocation2] sm:$0xff]
    %v82 = vld [vmem:[#allocation2 + $0x8] sm:$0xff]
    %v83 = vld [vmem:[#allocation2 + $0x10] sm:$0xff]
    %v84 = vld [vmem:[#allocation2 + $0x18] sm:$0xff]
    %v85 = vld [vmem:[#allocation2 + $0x20] sm:$0xff]
    %v86 = vld [vmem:[#allocation2 + $0x28] sm:$0xff]
    %v87 = vld [vmem:[#allocation2 + $0x30] sm:$0xff]
    %v88 = vld [vmem:[#allocation2 + $0x38] sm:$0xff]
    %v89 = vld [vmem:[#allocation2 + $0x40] sm:$0xff]
    %v90 = vld [vmem:[#allocation2 + $0x48] sm:$0xff]
    %v91 = vld [vmem:[#allocation2 + $0x50] sm:$0xff]
    %v92 = vld [vmem:[#allocation2 + $0x58] sm:$0xff]
    %v93 = vld [vmem:[#allocation2 + $0x60] sm:$0xf]
    %v94 = vld [vmem:[#allocation4] sm:$0xff]
    %v95 = vld [vmem:[#allocation4 + $0x8] sm:$0xff]
    %v96 = vld [vmem:[#allocation4 + $0x10] sm:$0xff]
    %v97 = vld [vmem:[#allocation4 + $0x18] sm:$0xff]
    %v98 = vld [vmem:[#allocation4 + $0x20] sm:$0xff]
    %v99 = vld [vmem:[#allocation4 + $0x28] sm:$0xff]
    %v100 = vld [vmem:[#allocation4 + $0x30] sm:$0xff]
    %v101 = vld [vmem:[#allocation4 + $0x38] sm:$0xff]
    %v102 = vld [vmem:[#allocation4 + $0x40] sm:$0xff]
    %v103 = vld [vmem:[#allocation4 + $0x48] sm:$0xff]
    %v104 = vld [vmem:[#allocation4 + $0x50] sm:$0xff]
    %v105 = vld [vmem:[#allocation4 + $0x58] sm:$0xff]
    %v106 = vld [vmem:[#allocation4 + $0x60] sm:$0xf]
    %v107 = vld [vmem:[%s2] sm:$0x1]
    %v109 = vlaneseq
    %v110 = vshrl.u32 %v109, 7
    %v111 = vsub.s32 0, %v110
    %v112 = vrot.slane %v107, %v111
    %vm114 = vcmask 818176
    %v116 = vsel %vm114, %v81, 0
    %v119 = vsel %vm114, %v82, 0
    %v122 = vsel %vm114, %v83, 0
    %v125 = vsel %vm114, %v84, 0
    %v128 = vsel %vm114, %v85, 0
    %v131 = vsel %vm114, %v86, 0
    %v134 = vsel %vm114, %v87, 0
    %v137 = vsel %vm114, %v88, 0
    %v140 = vsel %vm114, %v89, 0
    %v143 = vsel %vm114, %v90, 0
    %v146 = vsel %vm114, %v91, 0
    %v149 = vsel %vm114, %v92, 0
    %v152 = vsel %vm114, %v93, 0
    %vm154 = vcmask 1043456
    %v156 = vsel %vm154, %v106, 0
    %158 = vmatprep.subr.mxu0 0.0
    %159 = vmatpush1.msra.mxu0 %v94
    %160 = vmatprep.subr.mxu0 0.0
    %161 = vmatpush1.msra.mxu0 %v95
    %162 = vmatprep.subr.mxu0 0.0
    %163 = vmatpush1.msra.mxu0 %v96
    %164 = vmatprep.subr.mxu0 0.0
    %165 = vmatpush1.msra.mxu0 %v97
    %166 = vmatprep.subr.mxu0 0.0
    %167 = vmatpush1.msra.mxu0 %v98
    %168 = vmatprep.subr.mxu0 0.0
    %169 = vmatpush1.msra.mxu0 %v99
    %170 = vmatprep.subr.mxu0 0.0
    %171 = vmatpush1.msra.mxu0 %v100
    %172 = vmatprep.subr.mxu0 0.0
    %173 = vmatpush1.msra.mxu0 %v101
    %174 = vmatprep.subr.mxu0 0.0
    %175 = vmatpush1.msra.mxu0 %v102
    %176 = vmatprep.subr.mxu0 0.0
    %177 = vmatpush1.msra.mxu0 %v103
    %178 = vmatprep.subr.mxu0 0.0
    %179 = vmatpush1.msra.mxu0 %v104
    %180 = vmatprep.subr.mxu0 0.0
    %181 = vmatpush1.msra.mxu0 %v105
    %182 = vmatprep.subr.mxu0 0.0
    %183 = vmatpush1.msra.mxu0 %v156
    %184 = vmatprep.subr.mxu0 0.0
    %185 = vmatpush1.msra.mxu0 0.0
    %186 = vmatprep.subr.mxu0 0.0
    %187 = vmatpush1.msra.mxu0 0.0
    %188 = vmatprep.subr.mxu0 0.0
    %189 = vmatpush1.msra.mxu0 0.0
    %190 = vmatprep.subr.mxu0 0.0
    %191 = vmatpush1.msra.mxu0 0.0
    %192 = vmatprep.subr.mxu0 0.0
    %193 = vmatpush1.msra.mxu0 0.0
    %194 = vmatprep.subr.mxu0 0.0
    %195 = vmatpush1.msra.mxu0 0.0
    %196 = vmatprep.subr.mxu0 0.0
    %197 = vmatpush1.msra.mxu0 0.0
    %198 = vmatprep.subr.mxu0 0.0
    %199 = vmatpush1.msra.mxu0 0.0
    %200 = vmatprep.subr.mxu0 0.0
    %201 = vmatpush1.msra.mxu0 0.0
    %202 = vmatprep.subr.mxu0 0.0
    %203 = vmatpush1.msra.mxu0 0.0
    %204 = vmatprep.subr.mxu0 0.0
    %205 = vmatpush1.msra.mxu0 0.0
    %206 = vmatprep.subr.mxu0 0.0
    %207 = vmatpush1.msra.mxu0 0.0
    %208 = vmatprep.subr.mxu0 0.0
    %209 = vmatpush1.msra.mxu0 0.0
    %210 = vmatprep.subr.mxu0 0.0
    %211 = vmatpush1.msra.mxu0 0.0
    %212 = vmatprep.subr.mxu0 0.0
    %213 = vmatpush1.msra.mxu0 0.0
    %214 = vmatprep.subr.mxu0 0.0
    %215 = vmatpush1.msra.mxu0 0.0
    %216 = vmatprep.subr.mxu0 0.0
    %217 = vmatpush1.msra.mxu0 0.0
    %218 = vmatprep.subr.mxu0 0.0
    %219 = vmatpush1.msra.mxu0 0.0
    %220 = vmatprep.subr.mxu0 0.0
    %221 = vmatpush1.msra.mxu0 0.0
    %222 = vmatprep.mubr.f32.mxu0 0.0
    %223 = vmatmul.mubr.f32.gmra.mrb[0].mxu0 %v116
    %v224 = vpop.f32.mrb[0].mxu0
    %v225 = vadd.f32 %v112, %v224
    %v226 = vpop.f32.mrb[0].mxu0
    %227 = vmatprep.mubr.f32.mxu0 0.0
    %228 = vmatmul.mubr.f32.gmra.mrb[0].mxu0 %v119
    %v229 = vpop.f32.mrb[0].mxu0
    %v230 = vadd.f32 %v112, %v229
    %v231 = vpop.f32.mrb[0].mxu0
    %232 = vmatprep.mubr.f32.mxu0 0.0
    %233 = vmatmul.mubr.f32.gmra.mrb[0].mxu0 %v122
    %v234 = vpop.f32.mrb[0].mxu0
    %v235 = vadd.f32 %v112, %v234
    %v236 = vpop.f32.mrb[0].mxu0
    %237 = vmatprep.mubr.f32.mxu0 0.0
    %238 = vmatmul.mubr.f32.gmra.mrb[0].mxu0 %v125
    %v239 = vpop.f32.mrb[0].mxu0
    %v240 = vadd.f32 %v112, %v239
    %v241 = vpop.f32.mrb[0].mxu0
    %242 = vmatprep.mubr.f32.mxu0 0.0
    %243 = vmatmul.mubr.f32.gmra.mrb[0].mxu0 %v128
    %v244 = vpop.f32.mrb[0].mxu0
    %v245 = vadd.f32 %v112, %v244
    %v246 = vpop.f32.mrb[0].mxu0
    %247 = vmatprep.mubr.f32.mxu0 0.0
    %248 = vmatmul.mubr.f32.gmra.mrb[0].mxu0 %v131
    %v249 = vpop.f32.mrb[0].mxu0
    %v250 = vadd.f32 %v112, %v249
    %v251 = vpop.f32.mrb[0].mxu0
    %252 = vmatprep.mubr.f32.mxu0 0.0
    %253 = vmatmul.mubr.f32.gmra.mrb[0].mxu0 %v134
    %v254 = vpop.f32.mrb[0].mxu0
    %v255 = vadd.f32 %v112, %v254
    %v256 = vpop.f32.mrb[0].mxu0
    %257 = vmatprep.mubr.f32.mxu0 0.0
    %258 = vmatmul.mubr.f32.gmra.mrb[0].mxu0 %v137
    %v259 = vpop.f32.mrb[0].mxu0
    %v260 = vadd.f32 %v112, %v259
    %v261 = vpop.f32.mrb[0].mxu0
    %262 = vmatprep.mubr.f32.mxu0 0.0
    %263 = vmatmul.mubr.f32.gmra.mrb[0].mxu0 %v140
    %v264 = vpop.f32.mrb[0].mxu0
    %v265 = vadd.f32 %v112, %v264
    %v266 = vpop.f32.mrb[0].mxu0
    %267 = vmatprep.mubr.f32.mxu0 0.0
    %268 = vmatmul.mubr.f32.gmra.mrb[0].mxu0 %v143
    %v269 = vpop.f32.mrb[0].mxu0
    %v270 = vadd.f32 %v112, %v269
    %v271 = vpop.f32.mrb[0].mxu0
    %272 = vmatprep.mubr.f32.mxu0 0.0
    %273 = vmatmul.mubr.f32.gmra.mrb[0].mxu0 %v146
    %v274 = vpop.f32.mrb[0].mxu0
    %v275 = vadd.f32 %v112, %v274
    %v276 = vpop.f32.mrb[0].mxu0
    %277 = vmatprep.mubr.f32.mxu0 0.0
    %278 = vmatmul.mubr.f32.gmra.mrb[0].mxu0 %v149
    %v279 = vpop.f32.mrb[0].mxu0
    %v280 = vadd.f32 %v112, %v279
    %v281 = vpop.f32.mrb[0].mxu0
    %282 = vmatprep.mubr.f32.mxu0 0.0
    %283 = vmatmul.mubr.f32.gmra.mrb[0].mxu0 %v152
    %v284 = vpop.f32.mrb[0].mxu0
    %v285 = vadd.f32 %v112, %v284
    %v286 = vpop.f32.mrb[0].mxu0
    %287 = vdwg.mxu0
    %v288 = vmax.f32 %v225, 0.0
    %v289 = vmax.f32 %v230, 0.0
    %v290 = vmax.f32 %v235, 0.0
    %v291 = vmax.f32 %v240, 0.0
    %v292 = vmax.f32 %v245, 0.0
    %v293 = vmax.f32 %v250, 0.0
    %v294 = vmax.f32 %v255, 0.0
    %v295 = vmax.f32 %v260, 0.0
    %v296 = vmax.f32 %v265, 0.0
    %v297 = vmax.f32 %v270, 0.0
    %v298 = vmax.f32 %v275, 0.0
    %v299 = vmax.f32 %v280, 0.0
    %v300 = vmax.f32 %v285, 0.0
    %v301 = vld [vmem:[#allocation6] sm:$0xff]
    %v302 = vld [vmem:[#allocation6 + $0x8] sm:$0xff]
    %v303 = vld [vmem:[#allocation6 + $0x10] sm:$0xff]
    %v304 = vld [vmem:[#allocation6 + $0x18] sm:$0xff]
    %v305 = vld [vmem:[#allocation6 + $0x20] sm:$0xff]
    %v306 = vld [vmem:[#allocation6 + $0x28] sm:$0xff]
    %v307 = vld [vmem:[#allocation6 + $0x30] sm:$0xff]
    %v308 = vld [vmem:[#allocation6 + $0x38] sm:$0xff]
    %v309 = vld [vmem:[#allocation6 + $0x40] sm:$0xff]
    %v310 = vld [vmem:[#allocation6 + $0x48] sm:$0xff]
    %v311 = vld [vmem:[#allocation6 + $0x50] sm:$0xff]
    %v312 = vld [vmem:[#allocation6 + $0x58] sm:$0xff]
    %v313 = vld [vmem:[#allocation6 + $0x60] sm:$0xff]
    %v314 = vld [vmem:[#allocation6 + $0x68] sm:$0xff]
    %v315 = vld [vmem:[#allocation6 + $0x70] sm:$0xff]
    %v316 = vld [vmem:[#allocation6 + $0x78] sm:$0xff]
    %v317 = vld [vmem:[%s4] sm:$0x1]
    %v319 = vlaneseq
    %v320 = vshrl.u32 %v319, 7
    %v321 = vsub.s32 0, %v320
    %v322 = vrot.slane %v317, %v321
    %324 = vmatprep.subr.mxu0 0.0
    %325 = vmatpush1.msra.mxu0 %v301
    %326 = vmatprep.subr.mxu0 0.0
    %327 = vmatpush1.msra.mxu0 %v302
    %328 = vmatprep.subr.mxu0 0.0
    %329 = vmatpush1.msra.mxu0 %v303
    %330 = vmatprep.subr.mxu0 0.0
    %331 = vmatpush1.msra.mxu0 %v304
    %332 = vmatprep.subr.mxu0 0.0
    %333 = vmatpush1.msra.mxu0 %v305
    %334 = vmatprep.subr.mxu0 0.0
    %335 = vmatpush1.msra.mxu0 %v306
    %336 = vmatprep.subr.mxu0 0.0
    %337 = vmatpush1.msra.mxu0 %v307
    %338 = vmatprep.subr.mxu0 0.0
    %339 = vmatpush1.msra.mxu0 %v308
    %340 = vmatprep.subr.mxu0 0.0
    %341 = vmatpush1.msra.mxu0 %v309
    %342 = vmatprep.subr.mxu0 0.0
    %343 = vmatpush1.msra.mxu0 %v310
    %344 = vmatprep.subr.mxu0 0.0
    %345 = vmatpush1.msra.mxu0 %v311
    %346 = vmatprep.subr.mxu0 0.0
    %347 = vmatpush1.msra.mxu0 %v312
    %348 = vmatprep.subr.mxu0 0.0
    %349 = vmatpush1.msra.mxu0 %v313
    %350 = vmatprep.subr.mxu0 0.0
    %351 = vmatpush1.msra.mxu0 %v314
    %352 = vmatprep.subr.mxu0 0.0
    %353 = vmatpush1.msra.mxu0 %v315
    %354 = vmatprep.subr.mxu0 0.0
    %355 = vmatpush1.msra.mxu0 %v316
    %356 = vmatprep.subr.mxu0 0.0
    %357 = vmatpush1.msra.mxu0 0.0
    %358 = vmatprep.subr.mxu0 0.0
    %359 = vmatpush1.msra.mxu0 0.0
    %360 = vmatprep.subr.mxu0 0.0
    %361 = vmatpush1.msra.mxu0 0.0
    %362 = vmatprep.subr.mxu0 0.0
    %363 = vmatpush1.msra.mxu0 0.0
    %364 = vmatprep.subr.mxu0 0.0
    %365 = vmatpush1.msra.mxu0 0.0
    %366 = vmatprep.subr.mxu0 0.0
    %367 = vmatpush1.msra.mxu0 0.0
    %368 = vmatprep.subr.mxu0 0.0
    %369 = vmatpush1.msra.mxu0 0.0
    %370 = vmatprep.subr.mxu0 0.0
    %371 = vmatpush1.msra.mxu0 0.0
    %372 = vmatprep.subr.mxu0 0.0
    %373 = vmatpush1.msra.mxu0 0.0
    %374 = vmatprep.subr.mxu0 0.0
    %375 = vmatpush1.msra.mxu0 0.0
    %376 = vmatprep.subr.mxu0 0.0
    %377 = vmatpush1.msra.mxu0 0.0
    %378 = vmatprep.subr.mxu0 0.0
    %379 = vmatpush1.msra.mxu0 0.0
    %380 = vmatprep.subr.mxu0 0.0
    %381 = vmatpush1.msra.mxu0 0.0
    %382 = vmatprep.subr.mxu0 0.0
    %383 = vmatpush1.msra.mxu0 0.0
    %384 = vmatprep.subr.mxu0 0.0
    %385 = vmatpush1.msra.mxu0 0.0
    %386 = vmatprep.subr.mxu0 0.0
    %387 = vmatpush1.msra.mxu0 0.0
    %388 = vmatprep.mubr.f32.mxu0 0.0
    %389 = vmatmul.mubr.f32.gmra.mrb[0].mxu0 %v288
    %v390 = vpop.f32.mrb[0].mxu0
    %v391 = vadd.f32 %v322, %v390
    %v392 = vpop.f32.mrb[0].mxu0
    %393 = vmatprep.mubr.f32.mxu0 0.0
    %394 = vmatmul.mubr.f32.gmra.mrb[0].mxu0 %v289
    %v395 = vpop.f32.mrb[0].mxu0
    %v396 = vadd.f32 %v322, %v395
    %v397 = vpop.f32.mrb[0].mxu0
    %398 = vmatprep.mubr.f32.mxu0 0.0
    %399 = vmatmul.mubr.f32.gmra.mrb[0].mxu0 %v290
    %v400 = vpop.f32.mrb[0].mxu0
    %v401 = vadd.f32 %v322, %v400
    %v402 = vpop.f32.mrb[0].mxu0
    %403 = vmatprep.mubr.f32.mxu0 0.0
    %404 = vmatmul.mubr.f32.gmra.mrb[0].mxu0 %v291
    %v405 = vpop.f32.mrb[0].mxu0
    %v406 = vadd.f32 %v322, %v405
    %v407 = vpop.f32.mrb[0].mxu0
    %408 = vmatprep.mubr.f32.mxu0 0.0
    %409 = vmatmul.mubr.f32.gmra.mrb[0].mxu0 %v292
    %v410 = vpop.f32.mrb[0].mxu0
    %v411 = vadd.f32 %v322, %v410
    %v412 = vpop.f32.mrb[0].mxu0
    %413 = vmatprep.mubr.f32.mxu0 0.0
    %414 = vmatmul.mubr.f32.gmra.mrb[0].mxu0 %v293
    %v415 = vpop.f32.mrb[0].mxu0
    %v416 = vadd.f32 %v322, %v415
    %v417 = vpop.f32.mrb[0].mxu0
    %418 = vmatprep.mubr.f32.mxu0 0.0
    %419 = vmatmul.mubr.f32.gmra.mrb[0].mxu0 %v294
    %v420 = vpop.f32.mrb[0].mxu0
    %v421 = vadd.f32 %v322, %v420
    %v422 = vpop.f32.mrb[0].mxu0
    %423 = vmatprep.mubr.f32.mxu0 0.0
    %424 = vmatmul.mubr.f32.gmra.mrb[0].mxu0 %v295
    %v425 = vpop.f32.mrb[0].mxu0
    %v426 = vadd.f32 %v322, %v425
    %v427 = vpop.f32.mrb[0].mxu0
    %428 = vmatprep.mubr.f32.mxu0 0.0
    %429 = vmatmul.mubr.f32.gmra.mrb[0].mxu0 %v296
    %v430 = vpop.f32.mrb[0].mxu0
    %v431 = vadd.f32 %v322, %v430
    %v432 = vpop.f32.mrb[0].mxu0
    %433 = vmatprep.mubr.f32.mxu0 0.0
    %434 = vmatmul.mubr.f32.gmra.mrb[0].mxu0 %v297
    %v435 = vpop.f32.mrb[0].mxu0
    %v436 = vadd.f32 %v322, %v435
    %v437 = vpop.f32.mrb[0].mxu0
    %438 = vmatprep.mubr.f32.mxu0 0.0
    %439 = vmatmul.mubr.f32.gmra.mrb[0].mxu0 %v298
    %v440 = vpop.f32.mrb[0].mxu0
    %v441 = vadd.f32 %v322, %v440
    %v442 = vpop.f32.mrb[0].mxu0
    %443 = vmatprep.mubr.f32.mxu0 0.0
    %444 = vmatmul.mubr.f32.gmra.mrb[0].mxu0 %v299
    %v445 = vpop.f32.mrb[0].mxu0
    %v446 = vadd.f32 %v322, %v445
    %v447 = vpop.f32.mrb[0].mxu0
    %448 = vmatprep.mubr.f32.mxu0 0.0
    %449 = vmatmul.mubr.f32.gmra.mrb[0].mxu0 %v300
    %v450 = vpop.f32.mrb[0].mxu0
    %v451 = vadd.f32 %v322, %v450
    %v452 = vpop.f32.mrb[0].mxu0
    %453 = vdwg.mxu0
    %v454 = vmax.f32 %v391, 0.0
    %v455 = vmax.f32 %v396, 0.0
    %v456 = vmax.f32 %v401, 0.0
    %v457 = vmax.f32 %v406, 0.0
    %v458 = vmax.f32 %v411, 0.0
    %v459 = vmax.f32 %v416, 0.0
    %v460 = vmax.f32 %v421, 0.0
    %v461 = vmax.f32 %v426, 0.0
    %v462 = vmax.f32 %v431, 0.0
    %v463 = vmax.f32 %v436, 0.0
    %v464 = vmax.f32 %v441, 0.0
    %v465 = vmax.f32 %v446, 0.0
    %v466 = vmax.f32 %v451, 0.0
    %v467 = vld [vmem:[#allocation7] sm:$0xff]
    %v468 = vld [vmem:[#allocation7 + $0x8] sm:$0xff]
    %v469 = vld [vmem:[#allocation7 + $0x10] sm:$0xff]
    %v470 = vld [vmem:[#allocation7 + $0x18] sm:$0xff]
    %v471 = vld [vmem:[#allocation7 + $0x20] sm:$0xff]
    %v472 = vld [vmem:[#allocation7 + $0x28] sm:$0xff]
    %v473 = vld [vmem:[#allocation7 + $0x30] sm:$0xff]
    %v474 = vld [vmem:[#allocation7 + $0x38] sm:$0xff]
    %v475 = vld [vmem:[#allocation7 + $0x40] sm:$0xff]
    %v476 = vld [vmem:[#allocation7 + $0x48] sm:$0xff]
    %v477 = vld [vmem:[#allocation7 + $0x50] sm:$0xff]
    %v478 = vld [vmem:[#allocation7 + $0x58] sm:$0xff]
    %v479 = vld [vmem:[#allocation7 + $0x60] sm:$0xff]
    %v480 = vld [vmem:[#allocation7 + $0x68] sm:$0xff]
    %v481 = vld [vmem:[#allocation7 + $0x70] sm:$0xff]
    %v482 = vld [vmem:[#allocation7 + $0x78] sm:$0xff]
    %v483 = vld [vmem:[%s6] sm:$0x1]
    %v485 = vlaneseq
    %v486 = vshrl.u32 %v485, 7
    %v487 = vsub.s32 0, %v486
    %v488 = vrot.slane %v483, %v487
    %490 = vmatprep.subr.mxu0 0.0
    %491 = vmatpush1.msra.mxu0 %v467
    %492 = vmatprep.subr.mxu0 0.0
    %493 = vmatpush1.msra.mxu0 %v468
    %494 = vmatprep.subr.mxu0 0.0
    %495 = vmatpush1.msra.mxu0 %v469
    %496 = vmatprep.subr.mxu0 0.0
    %497 = vmatpush1.msra.mxu0 %v470
    %498 = vmatprep.subr.mxu0 0.0
    %499 = vmatpush1.msra.mxu0 %v471
    %500 = vmatprep.subr.mxu0 0.0
    %501 = vmatpush1.msra.mxu0 %v472
    %502 = vmatprep.subr.mxu0 0.0
    %503 = vmatpush1.msra.mxu0 %v473
    %504 = vmatprep.subr.mxu0 0.0
    %505 = vmatpush1.msra.mxu0 %v474
    %506 = vmatprep.subr.mxu0 0.0
    %507 = vmatpush1.msra.mxu0 %v475
    %508 = vmatprep.subr.mxu0 0.0
    %509 = vmatpush1.msra.mxu0 %v476
    %510 = vmatprep.subr.mxu0 0.0
    %511 = vmatpush1.msra.mxu0 %v477
    %512 = vmatprep.subr.mxu0 0.0
    %513 = vmatpush1.msra.mxu0 %v478
    %514 = vmatprep.subr.mxu0 0.0
    %515 = vmatpush1.msra.mxu0 %v479
    %516 = vmatprep.subr.mxu0 0.0
    %517 = vmatpush1.msra.mxu0 %v480
    %518 = vmatprep.subr.mxu0 0.0
    %519 = vmatpush1.msra.mxu0 %v481
    %520 = vmatprep.subr.mxu0 0.0
    %521 = vmatpush1.msra.mxu0 %v482
    %522 = vmatprep.subr.mxu0 0.0
    %523 = vmatpush1.msra.mxu0 0.0
    %524 = vmatprep.subr.mxu0 0.0
    %525 = vmatpush1.msra.mxu0 0.0
    %526 = vmatprep.subr.mxu0 0.0
    %527 = vmatpush1.msra.mxu0 0.0
    %528 = vmatprep.subr.mxu0 0.0
    %529 = vmatpush1.msra.mxu0 0.0
    %530 = vmatprep.subr.mxu0 0.0
    %531 = vmatpush1.msra.mxu0 0.0
    %532 = vmatprep.subr.mxu0 0.0
    %533 = vmatpush1.msra.mxu0 0.0
    %534 = vmatprep.subr.mxu0 0.0
    %535 = vmatpush1.msra.mxu0 0.0
    %536 = vmatprep.subr.mxu0 0.0
    %537 = vmatpush1.msra.mxu0 0.0
    %538 = vmatprep.subr.mxu0 0.0
    %539 = vmatpush1.msra.mxu0 0.0
    %540 = vmatprep.subr.mxu0 0.0
    %541 = vmatpush1.msra.mxu0 0.0
    %542 = vmatprep.subr.mxu0 0.0
    %543 = vmatpush1.msra.mxu0 0.0
    %544 = vmatprep.subr.mxu0 0.0
    %545 = vmatpush1.msra.mxu0 0.0
    %546 = vmatprep.subr.mxu0 0.0
    %547 = vmatpush1.msra.mxu0 0.0
    %548 = vmatprep.subr.mxu0 0.0
    %549 = vmatpush1.msra.mxu0 0.0
    %550 = vmatprep.subr.mxu0 0.0
    %551 = vmatpush1.msra.mxu0 0.0
    %552 = vmatprep.subr.mxu0 0.0
    %553 = vmatpush1.msra.mxu0 0.0
    %554 = vmatprep.mubr.f32.mxu0 0.0
    %555 = vmatmul.mubr.f32.gmra.mrb[0].mxu0 %v454
    %v556 = vpop.f32.mrb[0].mxu0
    %v557 = vadd.f32 %v488, %v556
    %v558 = vpop.f32.mrb[0].mxu0
    %559 = vmatprep.mubr.f32.mxu0 0.0
    %560 = vmatmul.mubr.f32.gmra.mrb[0].mxu0 %v455
    %v561 = vpop.f32.mrb[0].mxu0
    %v562 = vadd.f32 %v488, %v561
    %v563 = vpop.f32.mrb[0].mxu0
    %564 = vmatprep.mubr.f32.mxu0 0.0
    %565 = vmatmul.mubr.f32.gmra.mrb[0].mxu0 %v456
    %v566 = vpop.f32.mrb[0].mxu0
    %v567 = vadd.f32 %v488, %v566
    %v568 = vpop.f32.mrb[0].mxu0
    %569 = vmatprep.mubr.f32.mxu0 0.0
    %570 = vmatmul.mubr.f32.gmra.mrb[0].mxu0 %v457
    %v571 = vpop.f32.mrb[0].mxu0
    %v572 = vadd.f32 %v488, %v571
    %v573 = vpop.f32.mrb[0].mxu0
    %574 = vmatprep.mubr.f32.mxu0 0.0
    %575 = vmatmul.mubr.f32.gmra.mrb[0].mxu0 %v458
    %v576 = vpop.f32.mrb[0].mxu0
    %v577 = vadd.f32 %v488, %v576
    %v578 = vpop.f32.mrb[0].mxu0
    %579 = vmatprep.mubr.f32.mxu0 0.0
    %580 = vmatmul.mubr.f32.gmra.mrb[0].mxu0 %v459
    %v581 = vpop.f32.mrb[0].mxu0
    %v582 = vadd.f32 %v488, %v581
    %v583 = vpop.f32.mrb[0].mxu0
    %584 = vmatprep.mubr.f32.mxu0 0.0
    %585 = vmatmul.mubr.f32.gmra.mrb[0].mxu0 %v460
    %v586 = vpop.f32.mrb[0].mxu0
    %v587 = vadd.f32 %v488, %v586
    %v588 = vpop.f32.mrb[0].mxu0
    %589 = vmatprep.mubr.f32.mxu0 0.0
    %590 = vmatmul.mubr.f32.gmra.mrb[0].mxu0 %v461
    %v591 = vpop.f32.mrb[0].mxu0
    %v592 = vadd.f32 %v488, %v591
    %v593 = vpop.f32.mrb[0].mxu0
    %594 = vmatprep.mubr.f32.mxu0 0.0
    %595 = vmatmul.mubr.f32.gmra.mrb[0].mxu0 %v462
    %v596 = vpop.f32.mrb[0].mxu0
    %v597 = vadd.f32 %v488, %v596
    %v598 = vpop.f32.mrb[0].mxu0
    %599 = vmatprep.mubr.f32.mxu0 0.0
    %600 = vmatmul.mubr.f32.gmra.mrb[0].mxu0 %v463
    %v601 = vpop.f32.mrb[0].mxu0
    %v602 = vadd.f32 %v488, %v601
    %v603 = vpop.f32.mrb[0].mxu0
    %604 = vmatprep.mubr.f32.mxu0 0.0
    %605 = vmatmul.mubr.f32.gmra.mrb[0].mxu0 %v464
    %v606 = vpop.f32.mrb[0].mxu0
    %v607 = vadd.f32 %v488, %v606
    %v608 = vpop.f32.mrb[0].mxu0
    %609 = vmatprep.mubr.f32.mxu0 0.0
    %610 = vmatmul.mubr.f32.gmra.mrb[0].mxu0 %v465
    %v611 = vpop.f32.mrb[0].mxu0
    %v612 = vadd.f32 %v488, %v611
    %v613 = vpop.f32.mrb[0].mxu0
    %614 = vmatprep.mubr.f32.mxu0 0.0
    %615 = vmatmul.mubr.f32.gmra.mrb[0].mxu0 %v466
    %v616 = vpop.f32.mrb[0].mxu0
    %v617 = vadd.f32 %v488, %v616
    %v618 = vpop.f32.mrb[0].mxu0
    %619 = vdwg.mxu0
    %620 = vst [vmem:[%s7] sm:$0xff] %v557
    %621 = vst [vmem:[%s7 + $0x8] sm:$0xff] %v562
    %622 = vst [vmem:[%s7 + $0x10] sm:$0xff] %v567
    %623 = vst [vmem:[%s7 + $0x18] sm:$0xff] %v572
    %624 = vst [vmem:[%s7 + $0x20] sm:$0xff] %v577
    %625 = vst [vmem:[%s7 + $0x28] sm:$0xff] %v582
    %626 = vst [vmem:[%s7 + $0x30] sm:$0xff] %v587
    %627 = vst [vmem:[%s7 + $0x38] sm:$0xff] %v592
    %628 = vst [vmem:[%s7 + $0x40] sm:$0xff] %v597
    %629 = vst [vmem:[%s7 + $0x48] sm:$0xff] %v602
    %630 = vst [vmem:[%s7 + $0x50] sm:$0xff] %v607
    %631 = vst [vmem:[%s7 + $0x58] sm:$0xff] %v612
    %632 = vst [vmem:[%s7 + $0x60] sm:$0xf] %v617
    // Predicated region
    $region46: #{simple_mlp.1} parent=1 // pred_check
      _
    $region47: #{simple_mlp.1} parent=1 // pred_check_branch
      %634 = sbr.rel (0) target = $region49
    $region48: #{simple_mlp.1} parent=1 // pred_region
      _
    $region49: #{simple_mlp.1} parent=1 // pred_fallthru
      _
    // Predicated region
    $region50: #{simple_mlp.1} parent=1 // pred_check
      _
    $region51: #{simple_mlp.1} parent=1 // pred_check_branch
      %636 = sbr.rel (0) target = $region53
    $region52: #{simple_mlp.1} parent=1 // pred_region
      _
    $region53: #{simple_mlp.1} parent=1 // pred_fallthru
      _
    %637 = vsyncpa [#allocation3], 1
    %638 = vsyncpa [#allocation5], 1
    %639 = vsyncpa [#allocation8], 1

</llo_original>
